<compile_context>
chip_gen: v7x
topology: tpu7x:2x2x1
jax: 0.10.0
libtpu: 0.0.40
codegen_flags: <defaults>
</compile_context>

<pallas_src>
import jax
import jax.numpy as jnp
from jax.experimental import pallas as pl
from jax.experimental.pallas import tpu as pltpu


def linear_kernel(x_ref, w_ref, b_ref, o_ref):
    # x_ref: (B, K) f32 in VMEM
    # w_ref: (1, K) f32 in VMEM  (sublane broadcast over B is effectively free)
    # b_ref: (1, 1) f32 in SMEM  (scalar bias)
    # o_ref: (B, 1) f32 in VMEM
    prod = x_ref[...] * w_ref[...]                                    # VPU elementwise
    o_ref[...] = jnp.sum(prod, axis=1, keepdims=True) + b_ref[0, 0]   # XLU reduce + VPU add


def simple_model_forward(x, weight, bias):
    """PyTorch nn.Linear(10, 1) forward: y = x @ weight.T + bias.

    x:      (B, in_features)                   f32
    weight: (out_features, in_features)=(1,10) f32  (PyTorch layout)
    bias:   (out_features,)=(1,)               f32
    returns (B, out_features)=(B, 1)           f32
    """
    B, K = x.shape
    OUT, K2 = weight.shape
    assert K == K2 and OUT == 1 and bias.shape == (OUT,)

    b2d = bias.reshape(1, 1)   # scalar bias for SMEM

    out = pl.pallas_call(
        linear_kernel,
        out_shape=jax.ShapeDtypeStruct((B, OUT), x.dtype),
        in_specs=[
            pl.BlockSpec(memory_space=pltpu.MemorySpace.VMEM),   # x        (B, K)
            pl.BlockSpec(memory_space=pltpu.MemorySpace.VMEM),   # weight   (1, K)
            pl.BlockSpec(memory_space=pltpu.MemorySpace.SMEM),   # bias     (1, 1)
        ],
        out_specs=pl.BlockSpec(memory_space=pltpu.MemorySpace.VMEM),
    )(x, weight, b2d)

    return out                 # (B, 1), no wrapper-side layout plumbing


if __name__ == "__main__":
    key = jax.random.PRNGKey(0)
    kx, kw, kb = jax.random.split(key, 3)

    B, IN, OUT = 4, 10, 1

    # Deterministic params mimicking nn.Linear's uniform(-1/sqrt(in), 1/sqrt(in)) init.
    bound = 1.0 / (IN ** 0.5)
    weight = jax.random.uniform(kw, (OUT, IN), jnp.float32, -bound, bound)  # (out, in), PyTorch layout
    bias = jax.random.uniform(kb, (OUT,), jnp.float32, -bound, bound)
    x = jax.random.normal(kx, (B, IN), jnp.float32)

    out = simple_model_forward(x, weight, bias)
    out = jax.block_until_ready(out)

    # Reference: exact nn.Linear semantics.
    ref = x @ weight.T + bias
    assert out.shape == (B, OUT)
    assert jnp.allclose(out, ref, atol=1e-5, rtol=1e-5), "mismatch vs reference"

    print("KERNEL_OK")
</pallas_src>

<mosaic_0001>
module attributes {stable_mosaic.version = 11 : i64} {
  func.func @linear_kernel(%arg0: memref<4x10xf32, #tpu.memory_space<vmem>>, %arg1: memref<1x10xf32, #tpu.memory_space<vmem>>, %arg2: memref<1x1xf32, #tpu.memory_space<smem>>, %arg3: memref<4x1xf32, #tpu.memory_space<vmem>>) attributes {dimension_semantics = [], scalar_prefetch = 0 : i64, scratch_operands = 0 : i64, tpu.core_type = #tpu.core_type<tc>} {
    %c0 = arith.constant 0 : index
    %c0_0 = arith.constant 0 : index
    %0 = vector.load %arg0[%c0, %c0_0] : memref<4x10xf32, #tpu.memory_space<vmem>>, vector<4x10xf32>
    %c0_1 = arith.constant 0 : index
    %c0_2 = arith.constant 0 : index
    %1 = vector.load %arg1[%c0_1, %c0_2] : memref<1x10xf32, #tpu.memory_space<vmem>>, vector<1x10xf32>
    %2 = vector.broadcast %1 : vector<1x10xf32> to vector<4x10xf32>
    %3 = arith.mulf %0, %2 : vector<4x10xf32>
    %cst = arith.constant dense<0.000000e+00> : vector<4xf32>
    %4 = vector.multi_reduction <add>, %3, %cst [1] : vector<4x10xf32> to vector<4xf32>
    %5 = vector.shape_cast %4 : vector<4xf32> to vector<4x1xf32>
    %c0_3 = arith.constant 0 : index
    %c0_4 = arith.constant 0 : index
    %6 = memref.load %arg2[%c0_3, %c0_4] : memref<1x1xf32, #tpu.memory_space<smem>>
    %7 = vector.broadcast %6 : f32 to vector<4x1xf32>
    %8 = arith.addf %5, %7 : vector<4x1xf32>
    %c0_5 = arith.constant 0 : index
    %c0_6 = arith.constant 0 : index
    %9 = vector.load %arg3[%c0_5, %c0_6] : memref<4x1xf32, #tpu.memory_space<vmem>>, vector<4x1xf32>
    tpu.vector_store %arg3[%c0_5, %c0_6], %8 {strides = array<i32>} : memref<4x1xf32, #tpu.memory_space<vmem>>, vector<4x1xf32>,
    return
  }
}

</mosaic_0001>

<llo_original>
// kernel: tpu_custom_call.1
$region0: #{tpu_custom_call.1}
  #allocation0 [shape = 'u32[]', space=smem, size = 0x4, offset = 0x4, fixed_abs, tag = 'smem constant byte address 0x4 - core index']
  #allocation1 [shape = 'u32[144,128]{1,0:T(1,128)}', space=vmem, size = 0x12000, scoped, tag = 'internal scratch']
  #allocation2 [shape = 'f32[1,1]{1,0:T(1,128)S(6)}', space=smem, size = 0x200, scoped, tag = 'scoped memory for tpu_custom_call.1']
  %s0 = inlined_call_operand.hbm [shape: f32[4,10], index: 0, kind: input, shape index: {}]
  %s1 = inlined_call_operand.vmem [shape: f32[1,10], index: 1, kind: input, shape index: {}]
  %s2 = inlined_call_operand.<no memory space> [shape: f32[1,1], index: 2, kind: input, shape index: {}]
  %s3 = inlined_call_operand.vmem [shape: f32[4,1], index: 3, kind: output, shape index: {}]
  %s4 = sld [smem:[#allocation0]]
  $region26: #{tpu_custom_call.1} parent=0
    _
  %s6 = ssub.s32 1, %s4
  %s7 = scalar_select 0, %s6, %s4
  %8 = sst [smem:[#allocation2]] %s2
  $region1: #{tpu_custom_call.1} parent=0
    #allocation3 [shape = 'u8[2048]{0}', space=vmem, size = 0x800, scoped, tag = 'input window, operand 0, single buffered']
    #allocation4 [shape = 's32[1]{0}', space=sflag, size = 0x4, scoped, tag = 'scoped memory for tpu_custom_call.1']
    %9 = vsyncpa [#allocation4], 0
    // Predicated region
    $region2: #{tpu_custom_call.1} parent=1 // pred_check
      _
    $region3: #{tpu_custom_call.1} parent=1 // pred_check_branch
      %11 = sbr.rel (0) target = $region5
    $region4: #{tpu_custom_call.1} parent=1 // pred_region
      %s13 = ssub.s32 64, 64
      %14 = vsyncadd [#allocation4], %s13
      %s16 = sshll.u32 [#allocation3], 4
      %s17 = int_to_ptr.vmem [resolvable:$true] %s16
      %19 = dma.hbm_to_vmem [thread:$0]  %s0, 64, %s17, [#allocation4]
    $region5: #{tpu_custom_call.1} parent=1 // pred_fallthru
      _
    // Predicated region
    $region6: #{tpu_custom_call.1} parent=1 // pred_check
      _
    $region7: #{tpu_custom_call.1} parent=1 // pred_check_branch
      %21 = sbr.rel (0) target = $region9
    $region8: #{tpu_custom_call.1} parent=1 // pred_region
      _
    $region9: #{tpu_custom_call.1} parent=1 // pred_fallthru
      _
    // Predicated region
    $region10: #{tpu_custom_call.1} parent=1 // pred_check
      _
    $region11: #{tpu_custom_call.1} parent=1 // pred_check_branch
      %23 = sbr.rel (0) target = $region13
    $region12: #{tpu_custom_call.1} parent=1 // pred_region
      _
    $region13: #{tpu_custom_call.1} parent=1 // pred_fallthru
      _
    // Predicated region
    $region14: #{tpu_custom_call.1} parent=1 // pred_check
      _
    $region15: #{tpu_custom_call.1} parent=1 // pred_check_branch
      %25 = sbr.rel (0) target = $region17
    $region16: #{tpu_custom_call.1} parent=1 // pred_region
      %26 = dma.done [#allocation4], 64
    $region17: #{tpu_custom_call.1} parent=1 // pred_fallthru
      _
    %v27 = vld [vmem:[#allocation3] sm:$0xf]
    %v28 = vld [vmem:[%s1] sm:$0x1]
    %v30 = vlaneseq
    %v31 = vshrl.u32 %v30, 7
    %v32 = vsub.s32 0, %v31
    %v33 = vrot.slane %v28, %v32
    %v35 = vmul.f32 %v27, %v33
    %vm36 = vcmask 76800
    %v37 = vsel %vm36, %v35, 0.0
    %38 = vadd.xlane.f32.xlu0 %v37
    %v39 = vpop.xlane.xlu0 %38
    %s40 = sld [smem:[#allocation2]]
    %v41 = vstv %s40
    %v42 = vadd.f32 %v39, %v41
    %vm43 = vcmask 3072
    %44 = vst.msk [vmem:[%s3] sm:$0xf] %vm43, %v42
    // Predicated region
    $region18: #{tpu_custom_call.1} parent=1 // pred_check
      _
    $region19: #{tpu_custom_call.1} parent=1 // pred_check_branch
      %46 = sbr.rel (0) target = $region21
    $region20: #{tpu_custom_call.1} parent=1 // pred_region
      _
    $region21: #{tpu_custom_call.1} parent=1 // pred_fallthru
      _
    // Predicated region
    $region22: #{tpu_custom_call.1} parent=1 // pred_check
      _
    $region23: #{tpu_custom_call.1} parent=1 // pred_check_branch
      %48 = sbr.rel (0) target = $region25
    $region24: #{tpu_custom_call.1} parent=1 // pred_region
      _
    $region25: #{tpu_custom_call.1} parent=1 // pred_fallthru
      _
    %49 = vsyncpa [#allocation4], 1

</llo_original>
